<compile_context>
chip_gen: v5e
topology: v5e:2x2
jax: 0.10.0
libtpu: 0.0.40
codegen_flags: <defaults>
</compile_context>

<pallas_src>
import functools

import jax
import jax.numpy as jnp
import numpy as np
from jax import lax
from jax.experimental import pallas as pl
from jax.experimental.pallas import tpu as pltpu

EPS = 1e-6
NUM_CLASSES = 23
N_PAD = 128          # FC output padded to a full lane width -> unmasked store


# ---------------------------------------------------------------------------
# Kernel A: batched input projection, pipelined over row chunks.
# ---------------------------------------------------------------------------
def input_proj_kernel(x_ref, w_ih_t_ref, b_ref, gx_ref):
    """gx = x @ W_ih^T + (b_ih + b_hh) for a chunk of time-major rows."""
    gx_ref[...] = (jnp.dot(x_ref[...], w_ih_t_ref[...],
                           preferred_element_type=jnp.float32)
                   + b_ref[...])


# ---------------------------------------------------------------------------
# Kernel B: serial LSTM recurrence + LayerNormal + FC (all VMEM resident).
# ---------------------------------------------------------------------------
def lstm_ln_fc_kernel(gx_ref, w_hh_t_ref, ln_w_ref, ln_b_ref,
                      fc_w_t_ref, fc_b_ref, out_ref, hs_ref,
                      *, seq_len, unroll):
    """gx_ref  : (T, B_pad, 4H) precomputed input projection (time-major)
       w_hh_t  : (H, 4H)
       ln_w/b  : (1, H)
       fc_w_t  : (H, 128) zero-padded past col 23; fc_b: (1, 128)
       out_ref : (T, B_pad, 128)
       hs_ref  : (T, B_pad, H) scratch hidden states for batched LN + FC
    """
    T = seq_len
    B_pad = hs_ref.shape[1]
    H = hs_ref.shape[2]

    w_hh_t = w_hh_t_ref[...]

    h0 = jnp.zeros((B_pad, H), jnp.float32)
    c0 = jnp.zeros((B_pad, H), jnp.float32)

    def step(t, carry):
        h, c = carry
        # gx_ref[t] initializes the accumulator; dot accumulates into it
        # (MRB in-place accumulate on v7x, plain add on v5e/v6e).
        gates = gx_ref[t] + jnp.dot(h, w_hh_t,
                                    preferred_element_type=jnp.float32)
        if H % 128 == 0:
            # vreg-aligned lane groups: only the needed transcendentals.
            i_g = jax.nn.sigmoid(gates[:, 0 * H:1 * H])
            f_g = jax.nn.sigmoid(gates[:, 1 * H:2 * H])
            g_g = jnp.tanh(gates[:, 2 * H:3 * H])
            o_g = jax.nn.sigmoid(gates[:, 3 * H:4 * H])
        else:
            # tiny H: two full-tile EUP ops then cheap lane slices.
            sig = jax.nn.sigmoid(gates)
            th = jnp.tanh(gates)
            i_g = sig[:, 0 * H:1 * H]
            f_g = sig[:, 1 * H:2 * H]
            g_g = th[:, 2 * H:3 * H]
            o_g = sig[:, 3 * H:4 * H]
        c_new = f_g * c + i_g * g_g
        h_new = o_g * jnp.tanh(c_new)
        hs_ref[t] = h_new            # whole-tile store, off the carry chain
        return (h_new, c_new)

    lax.fori_loop(0, T, step, (h0, c0), unroll=unroll)

    # LayerNormal (torch.std semantics: unbiased ddof=1, clamp(min=eps)),
    # batched over all (T, B_pad) rows.  1/max(std,eps) == rsqrt(max(var,eps^2)).
    hs = hs_ref[...]
    mu = jnp.mean(hs, axis=-1, keepdims=True)
    var = jnp.sum((hs - mu) ** 2, axis=-1, keepdims=True) / (H - 1)
    inv_sigma = lax.rsqrt(jnp.maximum(var, EPS * EPS))
    y = (hs - mu) * inv_sigma * ln_w_ref[...] + ln_b_ref[...]     # (T,B_pad,H)

    # One lane-dense FC matmul + one unmasked 128-lane output store.
    y2 = y.reshape(T * B_pad, H)
    out2 = (jnp.dot(y2, fc_w_t_ref[...], preferred_element_type=jnp.float32)
            + fc_b_ref[...])
    out_ref[...] = out2.reshape(T, B_pad, N_PAD)


# ---------------------------------------------------------------------------
# Wrapper
# ---------------------------------------------------------------------------
def _mib(n):
    return n << 20


def _pick_time_chunk(seq_len, b_pad, budget_rows=512):
    """Largest divisor of seq_len whose chunk has <= budget_rows rows."""
    best = 1
    for d in range(1, seq_len + 1):
        if seq_len % d == 0 and d * b_pad <= budget_rows:
            best = d
    return best


def lst_model_forward(x, params):
    """x: (B, T, Din) float32 -> (B, T, 23) float32."""
    B, T, Din = x.shape
    w_ih, w_hh, b_ih, b_hh, ln_w, ln_b, fc_w, fc_b = params
    H = w_hh.shape[1]

    # Pad batch to the f32 sublane (8) so every per-step tile is aligned.
    B_pad = ((B + 7) // 8) * 8
    if B_pad != B:
        x = jnp.pad(x, ((0, B_pad - B), (0, 0), (0, 0)))

    # Time-major 2-D layout for the projection kernel.
    # TODO(synk): at production sizes fold this reorder into the projection
    # kernel's BlockSpec index_map ((b-chunk, t) blocks of the original
    # (B,T,Din) array) to avoid the extra HBM pass of this transpose.
    x2d = jnp.transpose(x, (1, 0, 2)).reshape(T * B_pad, Din)

    w_ih_t = jnp.transpose(w_ih)                   # (Din, 4H)
    w_hh_t = jnp.transpose(w_hh)                   # (H, 4H)
    b = (b_ih + b_hh).reshape(1, 4 * H)            # (1, 4H)
    ln_w2 = ln_w.reshape(1, H)
    ln_b2 = ln_b.reshape(1, H)
    # Zero-pad FC to 128 output lanes -> unmasked lane-dense store in-kernel.
    fc_w_t = jnp.zeros((H, N_PAD), jnp.float32).at[:, :NUM_CLASSES].set(
        jnp.transpose(fc_w))
    fc_b2 = jnp.zeros((1, N_PAD), jnp.float32).at[:, :NUM_CLASSES].set(
        fc_b.reshape(1, NUM_CLASSES))

    # --- Kernel A: pipelined input projection over row chunks --------------
    t_chunk = _pick_time_chunk(T, B_pad)
    ch_rows = t_chunk * B_pad
    n_chunks = T // t_chunk
    bytes_a = 4 * (2 * ch_rows * (Din + 4 * H) + Din * 4 * H + 4 * H)
    vmem_a = int(min(max(2 * bytes_a, _mib(4)), _mib(64)))

    gx2d = pl.pallas_call(
        input_proj_kernel,
        out_shape=jax.ShapeDtypeStruct((T * B_pad, 4 * H), jnp.float32),
        grid=(n_chunks,),
        in_specs=[
            pl.BlockSpec((ch_rows, Din), lambda i: (i, 0)),
            pl.BlockSpec((Din, 4 * H), lambda i: (0, 0)),   # resident weights
            pl.BlockSpec((1, 4 * H), lambda i: (0, 0)),
        ],
        out_specs=pl.BlockSpec((ch_rows, 4 * H), lambda i: (i, 0)),
        compiler_params=pltpu.CompilerParams(
            dimension_semantics=("parallel",),
            vmem_limit_bytes=vmem_a),
    )(x2d, w_ih_t, b)

    gx3 = gx2d.reshape(T, B_pad, 4 * H)            # free, tile-aligned reshape

    # --- Kernel B: recurrence + LayerNormal + FC ----------------------------
    # TODO(synk): for production B, add a batch grid axis (parallel) so the
    # independent recurrences are sharded across v7x's two TensorCores and the
    # per-step h @ W_hh matmul fills the MXU M dimension.
    bytes_b = 4 * (T * B_pad * (4 * H + H + N_PAD)
                   + H * 4 * H + 2 * H + H * N_PAD + N_PAD)
    vmem_b = int(min(max(2 * bytes_b, _mib(4)), _mib(64)))

    vmem = pl.BlockSpec(memory_space=pltpu.MemorySpace.VMEM)
    kernel = functools.partial(lstm_ln_fc_kernel, seq_len=T,
                               unroll=min(T, 8))
    out3 = pl.pallas_call(
        kernel,
        out_shape=jax.ShapeDtypeStruct((T, B_pad, N_PAD), jnp.float32),
        in_specs=[vmem] * 6,
        out_specs=vmem,
        scratch_shapes=[pltpu.VMEM((T, B_pad, H), jnp.float32)],
        compiler_params=pltpu.CompilerParams(vmem_limit_bytes=vmem_b),
    )(gx3, w_hh_t, ln_w2, ln_b2, fc_w_t, fc_b2)

    # (T, B_pad, 128) -> (B, T, 23)
    return jnp.transpose(out3, (1, 0, 2))[:B, :, :NUM_CLASSES]


# ---------------------------------------------------------------------------
# Synthetic params + pure-JAX reference
# ---------------------------------------------------------------------------
def make_params(key, input_size, hidden_size):
    """Deterministic synthetic init mirroring the PyTorch module shapes."""
    k = jax.random.split(key, 6)
    H = hidden_size
    bound = 1.0 / np.sqrt(H)                     # PyTorch LSTM default init
    w_ih = jax.random.uniform(k[0], (4 * H, input_size), jnp.float32,
                              -bound, bound)
    w_hh = jax.random.uniform(k[1], (4 * H, H), jnp.float32, -bound, bound)
    b_ih = jax.random.uniform(k[2], (4 * H,), jnp.float32, -bound, bound)
    b_hh = jax.random.uniform(k[3], (4 * H,), jnp.float32, -bound, bound)
    ln_w = jnp.ones((H,), jnp.float32)
    ln_b = jnp.zeros((H,), jnp.float32)
    # kaiming_normal_ on (23, H): std = sqrt(2 / fan_in) with fan_in = H
    fc_w = jax.random.normal(k[4], (NUM_CLASSES, H), jnp.float32) \
        * np.sqrt(2.0 / H)
    fc_b = jax.random.normal(k[5], (NUM_CLASSES,), jnp.float32) * 0.001
    return (w_ih, w_hh, b_ih, b_hh, ln_w, ln_b, fc_w, fc_b)


def reference_forward(x, params):
    """Pure-JAX reference of the PyTorch forward (for correctness check)."""
    w_ih, w_hh, b_ih, b_hh, ln_w, ln_b, fc_w, fc_b = params
    B, T, Din = x.shape
    H = w_hh.shape[1]
    h0 = jnp.zeros((B, H), jnp.float32)
    c0 = jnp.zeros((B, H), jnp.float32)

    def step(carry, x_t):
        h, c = carry
        gates = x_t @ w_ih.T + h @ w_hh.T + b_ih + b_hh
        i = jax.nn.sigmoid(gates[:, 0 * H:1 * H])
        f = jax.nn.sigmoid(gates[:, 1 * H:2 * H])
        g = jnp.tanh(gates[:, 2 * H:3 * H])
        o = jax.nn.sigmoid(gates[:, 3 * H:4 * H])
        c = f * c + i * g
        h = o * jnp.tanh(c)
        return (h, c), h

    _, hs = lax.scan(step, (h0, c0), jnp.swapaxes(x, 0, 1))
    hs = jnp.swapaxes(hs, 0, 1)                                  # (B, T, H)
    mu = jnp.mean(hs, axis=-1, keepdims=True)
    sigma = jnp.maximum(jnp.std(hs, axis=-1, ddof=1, keepdims=True), EPS)
    y = (hs - mu) / sigma * ln_w + ln_b
    return y @ fc_w.T + fc_b


if __name__ == "__main__":
    B, T, INPUT_SIZE, HIDDEN_SIZE = 2, 8, 32, 32   # small shapes
    key = jax.random.PRNGKey(0)
    kx, kp = jax.random.split(key)
    x = jax.random.normal(kx, (B, T, INPUT_SIZE), jnp.float32)
    params = make_params(kp, INPUT_SIZE, HIDDEN_SIZE)

    out = lst_model_forward(x, params)
    out = jax.block_until_ready(out)

    ref = jax.block_until_ready(reference_forward(x, params))
    assert out.shape == (B, T, NUM_CLASSES)
    np.testing.assert_allclose(np.asarray(out), np.asarray(ref),
                               rtol=1e-4, atol=1e-4)
    print("KERNEL_OK")
</pallas_src>

<mosaic_0001>
module attributes {stable_mosaic.version = 11 : i64} {
  func.func @input_proj_kernel(%arg0: i32, %arg1: memref<64x32xf32, #tpu.memory_space<vmem>>, %arg2: memref<32x128xf32, #tpu.memory_space<vmem>>, %arg3: memref<1x128xf32, #tpu.memory_space<vmem>>, %arg4: memref<64x128xf32, #tpu.memory_space<vmem>>) attributes {dimension_semantics = [#tpu.dimension_semantics<parallel>], iteration_bounds = array<i64: 1>, scalar_prefetch = 0 : i64, scratch_operands = 0 : i64, tpu.core_type = #tpu.core_type<tc>, window_params = [{transform_indices = @transform_0, window_bounds = array<i64: 64, 32>}, {pipeline_mode = #tpu.pipeline_mode<synchronous>, transform_indices = @transform_1, window_bounds = array<i64: 32, 128>}, {pipeline_mode = #tpu.pipeline_mode<synchronous>, transform_indices = @transform_2, window_bounds = array<i64: 1, 128>}, {transform_indices = @transform_3, window_bounds = array<i64: 64, 128>}]} {
    %c0 = arith.constant 0 : index
    %c0_0 = arith.constant 0 : index
    %0 = vector.load %arg1[%c0, %c0_0] : memref<64x32xf32, #tpu.memory_space<vmem>>, vector<64x32xf32>
    %c0_1 = arith.constant 0 : index
    %c0_2 = arith.constant 0 : index
    %1 = vector.load %arg2[%c0_1, %c0_2] : memref<32x128xf32, #tpu.memory_space<vmem>>, vector<32x128xf32>
    %cst = arith.constant dense<0.000000e+00> : vector<64x128xf32>
    %2 = tpu.matmul %0, %1, %cst {dimension_numbers = #tpu.dot_dimension_numbers<[1], [0], [0], [1], [0, 0, 1, 1], [], []>} : vector<64x32xf32>, vector<32x128xf32>, vector<64x128xf32> -> vector<64x128xf32>
    %c0_3 = arith.constant 0 : index
    %c0_4 = arith.constant 0 : index
    %3 = vector.load %arg3[%c0_3, %c0_4] : memref<1x128xf32, #tpu.memory_space<vmem>>, vector<1x128xf32>
    %4 = vector.broadcast %3 : vector<1x128xf32> to vector<64x128xf32>
    %5 = arith.addf %2, %4 : vector<64x128xf32>
    %c0_5 = arith.constant 0 : index
    %c0_6 = arith.constant 0 : index
    %6 = vector.load %arg4[%c0_5, %c0_6] : memref<64x128xf32, #tpu.memory_space<vmem>>, vector<64x128xf32>
    tpu.vector_store %arg4[%c0_5, %c0_6], %5 {strides = array<i32>} : memref<64x128xf32, #tpu.memory_space<vmem>>, vector<64x128xf32>,
    return
  }
  func.func @transform_0(%arg0: i32) -> (i32, i32) {
    %c0_i32 = arith.constant 0 : i32
    %c0_i32_0 = arith.constant 0 : i32
    return %arg0, %c0_i32 : i32, i32
  }
  func.func @transform_1(%arg0: i32) -> (i32, i32) {
    %c0_i32 = arith.constant 0 : i32
    %c0_i32_0 = arith.constant 0 : i32
    %c0_i32_1 = arith.constant 0 : i32
    return %c0_i32, %c0_i32_0 : i32, i32
  }
  func.func @transform_2(%arg0: i32) -> (i32, i32) {
    %c0_i32 = arith.constant 0 : i32
    %c0_i32_0 = arith.constant 0 : i32
    %c0_i32_1 = arith.constant 0 : i32
    return %c0_i32, %c0_i32_0 : i32, i32
  }
  func.func @transform_3(%arg0: i32) -> (i32, i32) {
    %c0_i32 = arith.constant 0 : i32
    %c0_i32_0 = arith.constant 0 : i32
    return %arg0, %c0_i32 : i32, i32
  }
}

</mosaic_0001>

<llo_original>
// kernel: tpu_custom_call.1
$region0: #{tpu_custom_call.1}
  #allocation0 [shape = 'u32[]', space=smem, size = 0x4, offset = 0x4, fixed_abs, tag = 'smem constant byte address 0x4 - core index']
  #allocation1 [shape = 'u32[72,128]{1,0:T(1,128)}', space=vmem, size = 0x9000, scoped, tag = 'internal scratch']
  %s0 = inlined_call_operand.vmem [shape: f32[64,32], index: 0, kind: input, shape index: {}]
  %s1 = inlined_call_operand.vmem [shape: f32[32,128], index: 1, kind: input, shape index: {}]
  %s2 = inlined_call_operand.vmem [shape: f32[1,128], index: 2, kind: input, shape index: {}]
  %s3 = inlined_call_operand.hbm [shape: f32[64,128], index: 3, kind: output, shape index: {}]
  %s4 = sld [smem:[#allocation0]]
  $region22: #{tpu_custom_call.1} parent=0
    _
  %s6 = ssub.s32 1, %s4
  %s7 = scalar_select 0, %s6, %s4
  $region1: #{tpu_custom_call.1} parent=0
    #allocation2 [shape = 'u8[32768]{0}', space=vmem, size = 0x8000, scoped, tag = 'output window, operand 0, single buffered']
    #allocation3 [shape = 's32[1]{0}', space=sflag, size = 0x4, scoped, tag = 'scoped memory for tpu_custom_call.1']
    %8 = vsyncpa [#allocation3], 0
    // Predicated region
    $region2: #{tpu_custom_call.1} parent=1 // pred_check
      _
    $region3: #{tpu_custom_call.1} parent=1 // pred_check_branch
      %10 = sbr.rel (0) target = $region5
    $region4: #{tpu_custom_call.1} parent=1 // pred_region
      _
    $region5: #{tpu_custom_call.1} parent=1 // pred_fallthru
      _
    // Predicated region
    $region6: #{tpu_custom_call.1} parent=1 // pred_check
      _
    $region7: #{tpu_custom_call.1} parent=1 // pred_check_branch
      %12 = sbr.rel (0) target = $region9
    $region8: #{tpu_custom_call.1} parent=1 // pred_region
      _
    $region9: #{tpu_custom_call.1} parent=1 // pred_fallthru
      _
    // Predicated region
    $region10: #{tpu_custom_call.1} parent=1 // pred_check
      _
    $region11: #{tpu_custom_call.1} parent=1 // pred_check_branch
      %14 = sbr.rel (0) target = $region13
    $region12: #{tpu_custom_call.1} parent=1 // pred_region
      _
    $region13: #{tpu_custom_call.1} parent=1 // pred_fallthru
      _
    %v15 = vld [vmem:[%s0] sm:$0xff]
    %v16 = vld [vmem:[%s0 + $0x8] sm:$0xff]
    %v17 = vld [vmem:[%s0 + $0x10] sm:$0xff]
    %v18 = vld [vmem:[%s0 + $0x18] sm:$0xff]
    %v19 = vld [vmem:[%s0 + $0x20] sm:$0xff]
    %v20 = vld [vmem:[%s0 + $0x28] sm:$0xff]
    %v21 = vld [vmem:[%s0 + $0x30] sm:$0xff]
    %v22 = vld [vmem:[%s0 + $0x38] sm:$0xff]
    %v23 = vld [vmem:[%s1] sm:$0xff]
    %v24 = vld [vmem:[%s1 + $0x8] sm:$0xff]
    %v25 = vld [vmem:[%s1 + $0x10] sm:$0xff]
    %v26 = vld [vmem:[%s1 + $0x18] sm:$0xff]
    %v27 = vld [vmem:[%s2] sm:$0x1]
    %v29 = vperm.slane %v27, 0
    %vm31 = vcmask 261120
    %v33 = vsel %vm31, %v15, 0
    %v36 = vsel %vm31, %v16, 0
    %v39 = vsel %vm31, %v17, 0
    %v42 = vsel %vm31, %v18, 0
    %v45 = vsel %vm31, %v19, 0
    %v48 = vsel %vm31, %v20, 0
    %v51 = vsel %vm31, %v21, 0
    %v54 = vsel %vm31, %v22, 0
    %56 = vmatpush.msra.mxu0 0.0
    %57 = vmatpush.msra.mxu0 0.0
    %58 = vmatpush.msra.mxu0 0.0
    %59 = vmatpush.msra.mxu0 0.0
    %60 = vmatpush.msra.mxu0 0.0
    %61 = vmatpush.msra.mxu0 0.0
    %62 = vmatpush.msra.mxu0 0.0
    %63 = vmatpush.msra.mxu0 0.0
    %64 = vmatpush.msra.mxu0 0.0
    %65 = vmatpush.msra.mxu0 0.0
    %66 = vmatpush.msra.mxu0 0.0
    %67 = vmatpush.msra.mxu0 0.0
    %68 = vmatpush.msra.mxu0 %v26
    %69 = vmatpush.msra.mxu0 %v25
    %70 = vmatpush.msra.mxu0 %v24
    %71 = vmatpush.msra.mxu0 %v23
    %72 = vmatmul.f32.gmra.mxu0 %v33
    %v73 = vpop.f32.mrf.mxu0
    %v74 = vadd.f32 %v29, %v73
    %75 = vmatmul.f32.gmra.mxu0 %v36
    %v76 = vpop.f32.mrf.mxu0
    %v77 = vadd.f32 %v29, %v76
    %78 = vmatmul.f32.gmra.mxu0 %v39
    %v79 = vpop.f32.mrf.mxu0
    %v80 = vadd.f32 %v29, %v79
    %81 = vmatmul.f32.gmra.mxu0 %v42
    %v82 = vpop.f32.mrf.mxu0
    %v83 = vadd.f32 %v29, %v82
    %84 = vmatmul.f32.gmra.mxu0 %v45
    %v85 = vpop.f32.mrf.mxu0
    %v86 = vadd.f32 %v29, %v85
    %87 = vmatmul.f32.gmra.mxu0 %v48
    %v88 = vpop.f32.mrf.mxu0
    %v89 = vadd.f32 %v29, %v88
    %90 = vmatmul.f32.gmra.mxu0 %v51
    %v91 = vpop.f32.mrf.mxu0
    %v92 = vadd.f32 %v29, %v91
    %93 = vmatmul.f32.gmra.mxu0 %v54
    %v94 = vpop.f32.mrf.mxu0
    %v95 = vadd.f32 %v29, %v94
    %96 = vdwg.mxu0
    %97 = vst [vmem:[#allocation2] sm:$0xff] %v74
    %98 = vst [vmem:[#allocation2 + $0x8] sm:$0xff] %v77
    %99 = vst [vmem:[#allocation2 + $0x10] sm:$0xff] %v80
    %100 = vst [vmem:[#allocation2 + $0x18] sm:$0xff] %v83
    %101 = vst [vmem:[#allocation2 + $0x20] sm:$0xff] %v86
    %102 = vst [vmem:[#allocation2 + $0x28] sm:$0xff] %v89
    %103 = vst [vmem:[#allocation2 + $0x30] sm:$0xff] %v92
    %104 = vst [vmem:[#allocation2 + $0x38] sm:$0xff] %v95
    // Predicated region
    $region14: #{tpu_custom_call.1} parent=1 // pred_check
      _
    $region15: #{tpu_custom_call.1} parent=1 // pred_check_branch
      %106 = sbr.rel (0) target = $region17
    $region16: #{tpu_custom_call.1} parent=1 // pred_region
      %108 = vsyncadd [#allocation3], 0
      %s109 = sshll.u32 [#allocation2], 4
      %s110 = int_to_ptr.vmem [resolvable:$true] %s109
      %s111 = sshll.u32 %s3, 4
      %s112 = int_to_ptr.hbm [resolvable:$true] %s111
      %117 = dma.vmem_to_hbm [thread:$0]  %s110, 1024, %s112, [#allocation3], 128, 128, 8
    $region17: #{tpu_custom_call.1} parent=1 // pred_fallthru
      _
    // Predicated region
    $region18: #{tpu_custom_call.1} parent=1 // pred_check
      _
    $region19: #{tpu_custom_call.1} parent=1 // pred_check_branch
      %119 = sbr.rel (0) target = $region21
    $region20: #{tpu_custom_call.1} parent=1 // pred_region
      %121 = dma.done [#allocation3], 1024
    $region21: #{tpu_custom_call.1} parent=1 // pred_fallthru
      _
    %122 = vsyncpa [#allocation3], 1

</llo_original>
